<compile_context>
chip_gen: v7x
topology: tpu7x:2x2x1
jax: 0.10.0
libtpu: 0.0.40
codegen_flags: <defaults>
</compile_context>

<pallas_src>
import functools

import jax
import jax.numpy as jnp
import numpy as np
from jax.experimental import pallas as pl
from jax.experimental.pallas import tpu as pltpu

# Zero padding (in lanes) added on each side of the flattened H*W axis so every
# shifted tap is a plain in-bounds static-offset load (must be >= pad*(W+1)).
LANE_PAD = 64


def _vmem():
    return pl.BlockSpec(memory_space=pltpu.MemorySpace.VMEM)


def _tap_offsets(ksize):
    pad = (ksize - 1) // 2
    return tuple((dy - pad, dx - pad) for dy in range(ksize) for dx in range(ksize))


# ---------------------------------------------------------------------------
# Host-side, one-time parameter packing (all tiny: <= a few KiB each).
# ---------------------------------------------------------------------------
def pack_conv_mix_matrix(conv_w, k):
    """(k*C, T*k*C) block matrix: conv rows = Wbig @ stacked masked shifted inputs."""
    c_out, c_in, ks, _ = np.shape(conv_w)
    assert c_out == c_in
    taps = _tap_offsets(ks)
    kc = k * c_out
    cw = np.asarray(conv_w, np.float32)
    wbig = np.zeros((kc, len(taps) * kc), np.float32)
    for t in range(len(taps)):
        dy, dx = t // ks, t % ks
        blk = cw[:, :, dy, dx]                       # (C_out, C_in)
        for s in range(k):                           # block-diagonal over samples
            r0 = s * c_out
            c0 = t * kc + s * c_in
            wbig[r0:r0 + c_out, c0:c0 + c_in] = blk
    return jnp.asarray(wbig)


def pack_tap_masks(H, W, ksize):
    """(T, H*W) 0/1 masks: tap (dy,dx) is valid at (y,x) iff the source pixel is in-bounds."""
    taps = _tap_offsets(ksize)
    j = np.arange(H * W)
    y, x = j // W, j % W
    m = np.zeros((len(taps), H * W), np.float32)
    for t, (dy, dx) in enumerate(taps):
        m[t] = ((y + dy >= 0) & (y + dy < H) & (x + dx >= 0) & (x + dx < W)).astype(np.float32)
    return jnp.asarray(m)


# ---------------------------------------------------------------------------
# Fused forward kernel.
#   xpad_ref : (k*C, HW + 2*LANE_PAD)  lane-padded flattened inputs
#   wbig_ref : (k*C, T*k*C)            per-tap channel-mixing blocks (block-diag over k)
#   mask_ref : (T, HW)                 0/1 validity masks per tap
#   cb_ref   : (k*C, 1)                conv bias per output row
#   kw_ref   : (k*C, 1)                kweights broadcast per row
#   fcw_ref  : (p*C, HW)               fc weight, lane-dense
#   fcb_ref  : (p, 1)                  fc bias
#   out_ref  : (p, 1)
# ---------------------------------------------------------------------------
def _cnn_forward_kernel(dt, k, c, hw, width, taps, lane_pad,
                        xpad_ref, wbig_ref, mask_ref, cb_ref, kw_ref,
                        fcw_ref, fcb_ref, out_ref):
    f32 = jnp.float32
    p = out_ref.shape[0]

    # Original (unshifted) inputs: (k*C, HW).
    x = xpad_ref[:, lane_pad:lane_pad + hw]

    # 25 shifted + masked copies of the input, stacked along sublanes ("im2col-lite").
    pieces = []
    for t, (dy, dx) in enumerate(taps):
        shift = dy * width + dx
        shifted = xpad_ref[:, lane_pad + shift: lane_pad + shift + hw]   # (k*C, HW)
        pieces.append(shifted * mask_ref[t:t + 1, :])                    # mask: (1, HW)
    stacked = jnp.concatenate(pieces, axis=0)                            # (T*k*C, HW)

    # Conv = per-sample channel mixing of the stacked taps: one small MXU matmul.
    conv = jnp.dot(wbig_ref[...], stacked, preferred_element_type=f32) + cb_ref[...]
    x1 = jnp.tanh(conv)                                                  # EUP
    z = dt * x1 + x                                                      # (k*C, HW)

    # kweights-weighted sum over the k samples -> (C, HW).
    zw = z * kw_ref[...]
    ssum = zw[0:c, :]
    for si in range(1, k):
        ssum = ssum + zw[si * c:(si + 1) * c, :]

    # FC layer: lane-dense elementwise multiply + reduce (exact f32 on the VPU).
    fcw = fcw_ref[...]                                                   # (p*C, HW)
    outs = []
    for j in range(p):
        pj = fcw[j * c:(j + 1) * c, :] * ssum                            # (C, HW)
        rj = jnp.sum(pj, axis=1, keepdims=True)                          # (C, 1)
        outs.append(jnp.sum(rj, axis=0, keepdims=True))                  # (1, 1)
    out_ref[...] = jnp.concatenate(outs, axis=0) + fcb_ref[...]          # (p, 1)


@functools.partial(jax.jit, static_argnames=("dt",))
def cnn_forward(x, params, dt):
    k, c, H, W = x.shape
    hw = H * W
    kc = k * c
    n_taps = params["tap_mask"].shape[0]
    ksize = int(round(n_taps ** 0.5))
    taps = _tap_offsets(ksize)
    pad = (ksize - 1) // 2
    assert LANE_PAD >= pad * W + pad
    p = params["fc_b_col"].shape[0]

    x_flat = x.reshape(kc, hw).astype(jnp.float32)
    x_pad = jnp.pad(x_flat, ((0, 0), (LANE_PAD, LANE_PAD)))

    kern = functools.partial(_cnn_forward_kernel, float(dt), k, c, hw, W, taps, LANE_PAD)

    flops = int(2 * kc * (n_taps * kc) * hw        # channel-mix matmul
                + 3 * n_taps * kc * hw             # tap masking + z update
                + 4 * p * c * hw)                  # fc multiply + reduce
    bytes_accessed = int(4 * (x_pad.size + params["conv_mix"].size + params["tap_mask"].size
                              + params["conv_b_col"].size + params["kw_col"].size
                              + params["fc_w2"].size + params["fc_b_col"].size + p))

    out = pl.pallas_call(
        kern,
        out_shape=jax.ShapeDtypeStruct((p, 1), jnp.float32),
        in_specs=[_vmem()] * 7,
        out_specs=_vmem(),
        cost_estimate=pl.CostEstimate(flops=flops,
                                      transcendentals=kc * hw,
                                      bytes_accessed=bytes_accessed),
    )(x_pad, params["conv_mix"], params["tap_mask"], params["conv_b_col"],
      params["kw_col"], params["fc_w2"], params["fc_b_col"])
    return out.reshape(1, p)


# ---------------------------------------------------------------------------
# Deterministic parameter init mirroring the PyTorch __init__ / _initialize_weights.
# ---------------------------------------------------------------------------
def _xavier_normal(key, shape, fan_in, fan_out):
    std = (2.0 / (fan_in + fan_out)) ** 0.5
    return (std * jax.random.normal(key, shape)).astype(jnp.float32)


def init_params(key, k, c, H, W, output_dim, ksize=5):
    kcv, kfc, kkw = jax.random.split(key, 3)
    chw = c * H * W
    # Conv2d(C, C, 5): xavier_normal scaled by 0.02; zero bias.
    conv_w = 0.02 * _xavier_normal(kcv, (c, c, ksize, ksize),
                                   c * ksize * ksize, c * ksize * ksize)
    conv_b = jnp.zeros((c,), jnp.float32)
    # Linear(width**2, output_dim) with width**2 == C*H*W (required by reshape(1,-1)).
    fc_w = _xavier_normal(kfc, (output_dim, chw), chw, output_dim)
    fc_b = jnp.zeros((output_dim,), jnp.float32)
    kweights = _xavier_normal(kkw, (k, 1), 1, k)

    raw = dict(conv_w=conv_w, conv_b=conv_b, fc_w=fc_w, fc_b=fc_b, kweights=kweights)
    packed = dict(
        conv_mix=pack_conv_mix_matrix(np.asarray(conv_w), k),                       # (kC, T*kC)
        tap_mask=pack_tap_masks(H, W, ksize),                                       # (T, HW)
        conv_b_col=jnp.asarray(np.tile(np.asarray(conv_b), k).reshape(k * c, 1)),   # (kC, 1)
        kw_col=jnp.asarray(np.repeat(np.asarray(kweights).reshape(k), c)
                           .reshape(k * c, 1)),                                     # (kC, 1)
        fc_w2=jnp.asarray(np.asarray(fc_w).reshape(output_dim * c, H * W)),         # (p*C, HW)
        fc_b_col=jnp.asarray(np.asarray(fc_b).reshape(output_dim, 1)),              # (p, 1)
    )
    return raw, packed


# ---------------------------------------------------------------------------
# Pure-JAX reference (direct translation of the PyTorch forward) for validation.
# ---------------------------------------------------------------------------
def reference_forward(x, conv_w, conv_b, kweights, fc_w, fc_b, dt):
    k, c, H, W = x.shape
    ksize = conv_w.shape[-1]
    pad = (ksize - 1) // 2
    xp = jnp.pad(x, ((0, 0), (0, 0), (pad, pad), (pad, pad)))
    chans = []
    for co in range(c):
        acc = jnp.zeros((k, H, W), jnp.float32)
        for ci in range(c):
            for dy in range(ksize):
                for dx in range(ksize):
                    acc = acc + conv_w[co, ci, dy, dx] * xp[:, ci, dy:dy + H, dx:dx + W]
        chans.append(acc + conv_b[co])
    x1 = jnp.tanh(jnp.stack(chans, axis=1))                     # (k, c, H, W)
    s = jnp.sum(kweights.reshape(k, 1, 1, 1) * (dt * x1 + x), axis=0)
    out = jnp.dot(s.reshape(1, -1), fc_w.T,
                  precision=jax.lax.Precision.HIGHEST) + fc_b.reshape(1, -1)
    return out


if __name__ == "__main__":
    key = jax.random.PRNGKey(0)
    k, c, H, W = 2, 4, 16, 16        # width = 32  (width**2 == C*H*W == 1024)
    output_dim = 2
    dt = 0.01

    kp, kx = jax.random.split(key)
    raw, params = init_params(kp, k, c, H, W, output_dim)
    x = 0.1 * jax.random.normal(kx, (k, c, H, W), dtype=jnp.float32)

    out = jax.block_until_ready(cnn_forward(x, params, dt=dt))
    assert out.shape == (1, output_dim)
    assert bool(jnp.all(jnp.isfinite(out)))

    ref = jax.block_until_ready(
        reference_forward(x, raw["conv_w"], raw["conv_b"], raw["kweights"],
                          raw["fc_w"], raw["fc_b"], dt))
    # Tolerance covers MXU accumulation of the small channel-mix matmul; FC path is f32 VPU.
    np.testing.assert_allclose(np.asarray(out), np.asarray(ref), rtol=1e-2, atol=1e-3)
    print("KERNEL_OK")
</pallas_src>

<mosaic_0001>
module attributes {stable_mosaic.version = 11 : i64} {
  func.func @_cnn_forward_kernel(%arg0: memref<8x384xf32, #tpu.memory_space<vmem>>, %arg1: memref<8x200xf32, #tpu.memory_space<vmem>>, %arg2: memref<25x256xf32, #tpu.memory_space<vmem>>, %arg3: memref<8x1xf32, #tpu.memory_space<vmem>>, %arg4: memref<8x1xf32, #tpu.memory_space<vmem>>, %arg5: memref<8x256xf32, #tpu.memory_space<vmem>>, %arg6: memref<2x1xf32, #tpu.memory_space<vmem>>, %arg7: memref<2x1xf32, #tpu.memory_space<vmem>>) attributes {dimension_semantics = [], scalar_prefetch = 0 : i64, scratch_operands = 0 : i64, tpu.core_type = #tpu.core_type<tc>} {
    %c0 = arith.constant 0 : index
    %c64 = arith.constant 64 : index
    %0 = vector.load %arg0[%c0, %c64] : memref<8x384xf32, #tpu.memory_space<vmem>>, vector<8x256xf32>
    %c0_0 = arith.constant 0 : index
    %c30 = arith.constant 30 : index
    %1 = vector.load %arg0[%c0_0, %c30] : memref<8x384xf32, #tpu.memory_space<vmem>>, vector<8x256xf32>
    %c0_1 = arith.constant 0 : index
    %c0_2 = arith.constant 0 : index
    %2 = vector.load %arg2[%c0_1, %c0_2] : memref<25x256xf32, #tpu.memory_space<vmem>>, vector<1x256xf32>
    %3 = vector.broadcast %2 : vector<1x256xf32> to vector<8x256xf32>
    %4 = arith.mulf %1, %3 : vector<8x256xf32>
    %c0_3 = arith.constant 0 : index
    %c31 = arith.constant 31 : index
    %5 = vector.load %arg0[%c0_3, %c31] : memref<8x384xf32, #tpu.memory_space<vmem>>, vector<8x256xf32>
    %c1 = arith.constant 1 : index
    %c0_4 = arith.constant 0 : index
    %6 = vector.load %arg2[%c1, %c0_4] : memref<25x256xf32, #tpu.memory_space<vmem>>, vector<1x256xf32>
    %7 = vector.broadcast %6 : vector<1x256xf32> to vector<8x256xf32>
    %8 = arith.mulf %5, %7 : vector<8x256xf32>
    %c0_5 = arith.constant 0 : index
    %c32 = arith.constant 32 : index
    %9 = vector.load %arg0[%c0_5, %c32] : memref<8x384xf32, #tpu.memory_space<vmem>>, vector<8x256xf32>
    %c2 = arith.constant 2 : index
    %c0_6 = arith.constant 0 : index
    %10 = vector.load %arg2[%c2, %c0_6] : memref<25x256xf32, #tpu.memory_space<vmem>>, vector<1x256xf32>
    %11 = vector.broadcast %10 : vector<1x256xf32> to vector<8x256xf32>
    %12 = arith.mulf %9, %11 : vector<8x256xf32>
    %c0_7 = arith.constant 0 : index
    %c33 = arith.constant 33 : index
    %13 = vector.load %arg0[%c0_7, %c33] : memref<8x384xf32, #tpu.memory_space<vmem>>, vector<8x256xf32>
    %c3 = arith.constant 3 : index
    %c0_8 = arith.constant 0 : index
    %14 = vector.load %arg2[%c3, %c0_8] : memref<25x256xf32, #tpu.memory_space<vmem>>, vector<1x256xf32>
    %15 = vector.broadcast %14 : vector<1x256xf32> to vector<8x256xf32>
    %16 = arith.mulf %13, %15 : vector<8x256xf32>
    %c0_9 = arith.constant 0 : index
    %c34 = arith.constant 34 : index
    %17 = vector.load %arg0[%c0_9, %c34] : memref<8x384xf32, #tpu.memory_space<vmem>>, vector<8x256xf32>
    %c4 = arith.constant 4 : index
    %c0_10 = arith.constant 0 : index
    %18 = vector.load %arg2[%c4, %c0_10] : memref<25x256xf32, #tpu.memory_space<vmem>>, vector<1x256xf32>
    %19 = vector.broadcast %18 : vector<1x256xf32> to vector<8x256xf32>
    %20 = arith.mulf %17, %19 : vector<8x256xf32>
    %c0_11 = arith.constant 0 : index
    %c46 = arith.constant 46 : index
    %21 = vector.load %arg0[%c0_11, %c46] : memref<8x384xf32, #tpu.memory_space<vmem>>, vector<8x256xf32>
    %c5 = arith.constant 5 : index
    %c0_12 = arith.constant 0 : index
    %22 = vector.load %arg2[%c5, %c0_12] : memref<25x256xf32, #tpu.memory_space<vmem>>, vector<1x256xf32>
    %23 = vector.broadcast %22 : vector<1x256xf32> to vector<8x256xf32>
    %24 = arith.mulf %21, %23 : vector<8x256xf32>
    %c0_13 = arith.constant 0 : index
    %c47 = arith.constant 47 : index
    %25 = vector.load %arg0[%c0_13, %c47] : memref<8x384xf32, #tpu.memory_space<vmem>>, vector<8x256xf32>
    %c6 = arith.constant 6 : index
    %c0_14 = arith.constant 0 : index
    %26 = vector.load %arg2[%c6, %c0_14] : memref<25x256xf32, #tpu.memory_space<vmem>>, vector<1x256xf32>
    %27 = vector.broadcast %26 : vector<1x256xf32> to vector<8x256xf32>
    %28 = arith.mulf %25, %27 : vector<8x256xf32>
    %c0_15 = arith.constant 0 : index
    %c48 = arith.constant 48 : index
    %29 = vector.load %arg0[%c0_15, %c48] : memref<8x384xf32, #tpu.memory_space<vmem>>, vector<8x256xf32>
    %c7 = arith.constant 7 : index
    %c0_16 = arith.constant 0 : index
    %30 = vector.load %arg2[%c7, %c0_16] : memref<25x256xf32, #tpu.memory_space<vmem>>, vector<1x256xf32>
    %31 = vector.broadcast %30 : vector<1x256xf32> to vector<8x256xf32>
    %32 = arith.mulf %29, %31 : vector<8x256xf32>
    %c0_17 = arith.constant 0 : index
    %c49 = arith.constant 49 : index
    %33 = vector.load %arg0[%c0_17, %c49] : memref<8x384xf32, #tpu.memory_space<vmem>>, vector<8x256xf32>
    %c8 = arith.constant 8 : index
    %c0_18 = arith.constant 0 : index
    %34 = vector.load %arg2[%c8, %c0_18] : memref<25x256xf32, #tpu.memory_space<vmem>>, vector<1x256xf32>
    %35 = vector.broadcast %34 : vector<1x256xf32> to vector<8x256xf32>
    %36 = arith.mulf %33, %35 : vector<8x256xf32>
    %c0_19 = arith.constant 0 : index
    %c50 = arith.constant 50 : index
    %37 = vector.load %arg0[%c0_19, %c50] : memref<8x384xf32, #tpu.memory_space<vmem>>, vector<8x256xf32>
    %c9 = arith.constant 9 : index
    %c0_20 = arith.constant 0 : index
    %38 = vector.load %arg2[%c9, %c0_20] : memref<25x256xf32, #tpu.memory_space<vmem>>, vector<1x256xf32>
    %39 = vector.broadcast %38 : vector<1x256xf32> to vector<8x256xf32>
    %40 = arith.mulf %37, %39 : vector<8x256xf32>
    %c0_21 = arith.constant 0 : index
    %c62 = arith.constant 62 : index
    %41 = vector.load %arg0[%c0_21, %c62] : memref<8x384xf32, #tpu.memory_space<vmem>>, vector<8x256xf32>
    %c10 = arith.constant 10 : index
    %c0_22 = arith.constant 0 : index
    %42 = vector.load %arg2[%c10, %c0_22] : memref<25x256xf32, #tpu.memory_space<vmem>>, vector<1x256xf32>
    %43 = vector.broadcast %42 : vector<1x256xf32> to vector<8x256xf32>
    %44 = arith.mulf %41, %43 : vector<8x256xf32>
    %c0_23 = arith.constant 0 : index
    %c63 = arith.constant 63 : index
    %45 = vector.load %arg0[%c0_23, %c63] : memref<8x384xf32, #tpu.memory_space<vmem>>, vector<8x256xf32>
    %c11 = arith.constant 11 : index
    %c0_24 = arith.constant 0 : index
    %46 = vector.load %arg2[%c11, %c0_24] : memref<25x256xf32, #tpu.memory_space<vmem>>, vector<1x256xf32>
    %47 = vector.broadcast %46 : vector<1x256xf32> to vector<8x256xf32>
    %48 = arith.mulf %45, %47 : vector<8x256xf32>
    %c0_25 = arith.constant 0 : index
    %c64_26 = arith.constant 64 : index
    %49 = vector.load %arg0[%c0_25, %c64_26] : memref<8x384xf32, #tpu.memory_space<vmem>>, vector<8x256xf32>
    %c12 = arith.constant 12 : index
    %c0_27 = arith.constant 0 : index
    %50 = vector.load %arg2[%c12, %c0_27] : memref<25x256xf32, #tpu.memory_space<vmem>>, vector<1x256xf32>
    %51 = vector.broadcast %50 : vector<1x256xf32> to vector<8x256xf32>
    %52 = arith.mulf %49, %51 : vector<8x256xf32>
    %c0_28 = arith.constant 0 : index
    %c65 = arith.constant 65 : index
    %53 = vector.load %arg0[%c0_28, %c65] : memref<8x384xf32, #tpu.memory_space<vmem>>, vector<8x256xf32>
    %c13 = arith.constant 13 : index
    %c0_29 = arith.constant 0 : index
    %54 = vector.load %arg2[%c13, %c0_29] : memref<25x256xf32, #tpu.memory_space<vmem>>, vector<1x256xf32>
    %55 = vector.broadcast %54 : vector<1x256xf32> to vector<8x256xf32>
    %56 = arith.mulf %53, %55 : vector<8x256xf32>
    %c0_30 = arith.constant 0 : index
    %c66 = arith.constant 66 : index
    %57 = vector.load %arg0[%c0_30, %c66] : memref<8x384xf32, #tpu.memory_space<vmem>>, vector<8x256xf32>
    %c14 = arith.constant 14 : index
    %c0_31 = arith.constant 0 : index
    %58 = vector.load %arg2[%c14, %c0_31] : memref<25x256xf32, #tpu.memory_space<vmem>>, vector<1x256xf32>
    %59 = vector.broadcast %58 : vector<1x256xf32> to vector<8x256xf32>
    %60 = arith.mulf %57, %59 : vector<8x256xf32>
    %c0_32 = arith.constant 0 : index
    %c78 = arith.constant 78 : index
    %61 = vector.load %arg0[%c0_32, %c78] : memref<8x384xf32, #tpu.memory_space<vmem>>, vector<8x256xf32>
    %c15 = arith.constant 15 : index
    %c0_33 = arith.constant 0 : index
    %62 = vector.load %arg2[%c15, %c0_33] : memref<25x256xf32, #tpu.memory_space<vmem>>, vector<1x256xf32>
    %63 = vector.broadcast %62 : vector<1x256xf32> to vector<8x256xf32>
    %64 = arith.mulf %61, %63 : vector<8x256xf32>
    %c0_34 = arith.constant 0 : index
    %c79 = arith.constant 79 : index
    %65 = vector.load %arg0[%c0_34, %c79] : memref<8x384xf32, #tpu.memory_space<vmem>>, vector<8x256xf32>
    %c16 = arith.constant 16 : index
    %c0_35 = arith.constant 0 : index
    %66 = vector.load %arg2[%c16, %c0_35] : memref<25x256xf32, #tpu.memory_space<vmem>>, vector<1x256xf32>
    %67 = vector.broadcast %66 : vector<1x256xf32> to vector<8x256xf32>
    %68 = arith.mulf %65, %67 : vector<8x256xf32>
    %c0_36 = arith.constant 0 : index
    %c80 = arith.constant 80 : index
    %69 = vector.load %arg0[%c0_36, %c80] : memref<8x384xf32, #tpu.memory_space<vmem>>, vector<8x256xf32>
    %c17 = arith.constant 17 : index
    %c0_37 = arith.constant 0 : index
    %70 = vector.load %arg2[%c17, %c0_37] : memref<25x256xf32, #tpu.memory_space<vmem>>, vector<1x256xf32>
    %71 = vector.broadcast %70 : vector<1x256xf32> to vector<8x256xf32>
    %72 = arith.mulf %69, %71 : vector<8x256xf32>
    %c0_38 = arith.constant 0 : index
    %c81 = arith.constant 81 : index
    %73 = vector.load %arg0[%c0_38, %c81] : memref<8x384xf32, #tpu.memory_space<vmem>>, vector<8x256xf32>
    %c18 = arith.constant 18 : index
    %c0_39 = arith.constant 0 : index
    %74 = vector.load %arg2[%c18, %c0_39] : memref<25x256xf32, #tpu.memory_space<vmem>>, vector<1x256xf32>
    %75 = vector.broadcast %74 : vector<1x256xf32> to vector<8x256xf32>
    %76 = arith.mulf %73, %75 : vector<8x256xf32>
    %c0_40 = arith.constant 0 : index
    %c82 = arith.constant 82 : index
    %77 = vector.load %arg0[%c0_40, %c82] : memref<8x384xf32, #tpu.memory_space<vmem>>, vector<8x256xf32>
    %c19 = arith.constant 19 : index
    %c0_41 = arith.constant 0 : index
    %78 = vector.load %arg2[%c19, %c0_41] : memref<25x256xf32, #tpu.memory_space<vmem>>, vector<1x256xf32>
    %79 = vector.broadcast %78 : vector<1x256xf32> to vector<8x256xf32>
    %80 = arith.mulf %77, %79 : vector<8x256xf32>
    %c0_42 = arith.constant 0 : index
    %c94 = arith.constant 94 : index
    %81 = vector.load %arg0[%c0_42, %c94] : memref<8x384xf32, #tpu.memory_space<vmem>>, vector<8x256xf32>
    %c20 = arith.constant 20 : index
    %c0_43 = arith.constant 0 : index
    %82 = vector.load %arg2[%c20, %c0_43] : memref<25x256xf32, #tpu.memory_space<vmem>>, vector<1x256xf32>
    %83 = vector.broadcast %82 : vector<1x256xf32> to vector<8x256xf32>
    %84 = arith.mulf %81, %83 : vector<8x256xf32>
    %c0_44 = arith.constant 0 : index
    %c95 = arith.constant 95 : index
    %85 = vector.load %arg0[%c0_44, %c95] : memref<8x384xf32, #tpu.memory_space<vmem>>, vector<8x256xf32>
    %c21 = arith.constant 21 : index
    %c0_45 = arith.constant 0 : index
    %86 = vector.load %arg2[%c21, %c0_45] : memref<25x256xf32, #tpu.memory_space<vmem>>, vector<1x256xf32>
    %87 = vector.broadcast %86 : vector<1x256xf32> to vector<8x256xf32>
    %88 = arith.mulf %85, %87 : vector<8x256xf32>
    %c0_46 = arith.constant 0 : index
    %c96 = arith.constant 96 : index
    %89 = vector.load %arg0[%c0_46, %c96] : memref<8x384xf32, #tpu.memory_space<vmem>>, vector<8x256xf32>
    %c22 = arith.constant 22 : index
    %c0_47 = arith.constant 0 : index
    %90 = vector.load %arg2[%c22, %c0_47] : memref<25x256xf32, #tpu.memory_space<vmem>>, vector<1x256xf32>
    %91 = vector.broadcast %90 : vector<1x256xf32> to vector<8x256xf32>
    %92 = arith.mulf %89, %91 : vector<8x256xf32>
    %c0_48 = arith.constant 0 : index
    %c97 = arith.constant 97 : index
    %93 = vector.load %arg0[%c0_48, %c97] : memref<8x384xf32, #tpu.memory_space<vmem>>, vector<8x256xf32>
    %c23 = arith.constant 23 : index
    %c0_49 = arith.constant 0 : index
    %94 = vector.load %arg2[%c23, %c0_49] : memref<25x256xf32, #tpu.memory_space<vmem>>, vector<1x256xf32>
    %95 = vector.broadcast %94 : vector<1x256xf32> to vector<8x256xf32>
    %96 = arith.mulf %93, %95 : vector<8x256xf32>
    %c0_50 = arith.constant 0 : index
    %c98 = arith.constant 98 : index
    %97 = vector.load %arg0[%c0_50, %c98] : memref<8x384xf32, #tpu.memory_space<vmem>>, vector<8x256xf32>
    %c24 = arith.constant 24 : index
    %c0_51 = arith.constant 0 : index
    %98 = vector.load %arg2[%c24, %c0_51] : memref<25x256xf32, #tpu.memory_space<vmem>>, vector<1x256xf32>
    %99 = vector.broadcast %98 : vector<1x256xf32> to vector<8x256xf32>
    %100 = arith.mulf %97, %99 : vector<8x256xf32>
    %101 = tpu.concatenate %4, %8, %12, %16, %20, %24, %28, %32, %36, %40, %44, %48, %52, %56, %60, %64 in 0 : vector<8x256xf32>, vector<8x256xf32>, vector<8x256xf32>, vector<8x256xf32>, vector<8x256xf32>, vector<8x256xf32>, vector<8x256xf32>, vector<8x256xf32>, vector<8x256xf32>, vector<8x256xf32>, vector<8x256xf32>, vector<8x256xf32>, vector<8x256xf32>, vector<8x256xf32>, vector<8x256xf32>, vector<8x256xf32> -> vector<128x256xf32>
    %102 = tpu.concatenate %68, %72, %76, %80, %84, %88, %92, %96, %100 in 0 : vector<8x256xf32>, vector<8x256xf32>, vector<8x256xf32>, vector<8x256xf32>, vector<8x256xf32>, vector<8x256xf32>, vector<8x256xf32>, vector<8x256xf32>, vector<8x256xf32> -> vector<72x256xf32>
    %103 = tpu.concatenate %101, %102 in 0 : vector<128x256xf32>, vector<72x256xf32> -> vector<200x256xf32>
    %c0_52 = arith.constant 0 : index
    %c0_53 = arith.constant 0 : index
    %104 = vector.load %arg1[%c0_52, %c0_53] : memref<8x200xf32, #tpu.memory_space<vmem>>, vector<8x200xf32>
    %cst = arith.constant dense<0.000000e+00> : vector<8x256xf32>
    %105 = tpu.matmul %104, %103, %cst {dimension_numbers = #tpu.dot_dimension_numbers<[1], [0], [0], [1], [0, 0, 1, 1], [], []>} : vector<8x200xf32>, vector<200x256xf32>, vector<8x256xf32> -> vector<8x256xf32>
    %c0_54 = arith.constant 0 : index
    %c0_55 = arith.constant 0 : index
    %106 = vector.load %arg3[%c0_54, %c0_55] : memref<8x1xf32, #tpu.memory_space<vmem>>, vector<8x1xf32>
    %107 = vector.broadcast %106 : vector<8x1xf32> to vector<8x256xf32>
    %108 = arith.addf %105, %107 : vector<8x256xf32>
    %109 = math.tanh %108 : vector<8x256xf32>
    %cst_56 = arith.constant 0.00999999977 : f32
    %110 = vector.broadcast %cst_56 : f32 to vector<8x256xf32>
    %111 = arith.mulf %110, %109 : vector<8x256xf32>
    %112 = arith.addf %111, %0 : vector<8x256xf32>
    %c0_57 = arith.constant 0 : index
    %c0_58 = arith.constant 0 : index
    %113 = vector.load %arg4[%c0_57, %c0_58] : memref<8x1xf32, #tpu.memory_space<vmem>>, vector<8x1xf32>
    %114 = vector.broadcast %113 : vector<8x1xf32> to vector<8x256xf32>
    %115 = arith.mulf %112, %114 : vector<8x256xf32>
    %116 = vector.extract_strided_slice %115 {offsets = [0, 0], sizes = [4, 256], strides = [1, 1]} : vector<8x256xf32> to vector<4x256xf32>
    %117 = vector.extract_strided_slice %115 {offsets = [4, 0], sizes = [4, 256], strides = [1, 1]} : vector<8x256xf32> to vector<4x256xf32>
    %118 = arith.addf %116, %117 : vector<4x256xf32>
    %c0_59 = arith.constant 0 : index
    %c0_60 = arith.constant 0 : index
    %119 = vector.load %arg5[%c0_59, %c0_60] : memref<8x256xf32, #tpu.memory_space<vmem>>, vector<8x256xf32>
    %120 = vector.extract_strided_slice %119 {offsets = [0, 0], sizes = [4, 256], strides = [1, 1]} : vector<8x256xf32> to vector<4x256xf32>
    %121 = arith.mulf %120, %118 : vector<4x256xf32>
    %cst_61 = arith.constant dense<0.000000e+00> : vector<4xf32>
    %122 = vector.multi_reduction <add>, %121, %cst_61 [1] : vector<4x256xf32> to vector<4xf32>
    %123 = vector.shape_cast %122 : vector<4xf32> to vector<4x1xf32>
    %cst_62 = arith.constant dense<0.000000e+00> : vector<1xf32>
    %124 = vector.multi_reduction <add>, %123, %cst_62 [0] : vector<4x1xf32> to vector<1xf32>
    %125 = vector.shape_cast %124 : vector<1xf32> to vector<1x1xf32>
    %126 = vector.extract_strided_slice %119 {offsets = [4, 0], sizes = [4, 256], strides = [1, 1]} : vector<8x256xf32> to vector<4x256xf32>
    %127 = arith.mulf %126, %118 : vector<4x256xf32>
    %cst_63 = arith.constant dense<0.000000e+00> : vector<4xf32>
    %128 = vector.multi_reduction <add>, %127, %cst_63 [1] : vector<4x256xf32> to vector<4xf32>
    %129 = vector.shape_cast %128 : vector<4xf32> to vector<4x1xf32>
    %cst_64 = arith.constant dense<0.000000e+00> : vector<1xf32>
    %130 = vector.multi_reduction <add>, %129, %cst_64 [0] : vector<4x1xf32> to vector<1xf32>
    %131 = vector.shape_cast %130 : vector<1xf32> to vector<1x1xf32>
    %132 = tpu.concatenate %125, %131 in 0 : vector<1x1xf32>, vector<1x1xf32> -> vector<2x1xf32>
    %c0_65 = arith.constant 0 : index
    %c0_66 = arith.constant 0 : index
    %133 = vector.load %arg6[%c0_65, %c0_66] : memref<2x1xf32, #tpu.memory_space<vmem>>, vector<2x1xf32>
    %134 = arith.addf %132, %133 : vector<2x1xf32>
    %c0_67 = arith.constant 0 : index
    %c0_68 = arith.constant 0 : index
    %135 = vector.load %arg7[%c0_67, %c0_68] : memref<2x1xf32, #tpu.memory_space<vmem>>, vector<2x1xf32>
    tpu.vector_store %arg7[%c0_67, %c0_68], %134 {strides = array<i32>} : memref<2x1xf32, #tpu.memory_space<vmem>>, vector<2x1xf32>,
    return
  }
}

</mosaic_0001>

<llo_original>
// kernel: cnn_forward.1
$region0: #{cnn_forward.1}
  #allocation0 [shape = 'u32[]', space=smem, size = 0x4, offset = 0x4, fixed_abs, tag = 'smem constant byte address 0x4 - core index']
  #allocation1 [shape = 'u32[144,128]{1,0:T(1,128)}', space=vmem, size = 0x12000, scoped, tag = 'internal scratch']
  %s0 = inlined_call_operand.vmem [shape: f32[8,384], index: 0, kind: input, shape index: {}]
  %s1 = inlined_call_operand.vmem [shape: f32[8,200], index: 1, kind: input, shape index: {}]
  %s2 = inlined_call_operand.vmem [shape: f32[25,256], index: 2, kind: input, shape index: {}]
  %s3 = inlined_call_operand.vmem [shape: f32[8,1], index: 3, kind: input, shape index: {}]
  %s4 = inlined_call_operand.vmem [shape: f32[8,1], index: 4, kind: input, shape index: {}]
  %s5 = inlined_call_operand.vmem [shape: f32[8,256], index: 5, kind: input, shape index: {}]
  %s6 = inlined_call_operand.vmem [shape: f32[2,1], index: 6, kind: input, shape index: {}]
  %s7 = inlined_call_operand.vmem [shape: f32[2,1], index: 7, kind: output, shape index: {}]
  %s8 = sld [smem:[#allocation0]]
  $region38: #{cnn_forward.1} parent=0
    _
  %s10 = ssub.s32 1, %s8
  %s11 = scalar_select 0, %s10, %s8
  // Predicated region
  $region2: #{cnn_forward.1} parent=0 // pred_check
    _
  $region3: #{cnn_forward.1} parent=0 // pred_check_branch
    %13 = sbr.rel (0) target = $region5
  $region4: #{cnn_forward.1} parent=0 // pred_region
    _
  $region5: #{cnn_forward.1} parent=0 // pred_fallthru
    _
  // Predicated region
  $region6: #{cnn_forward.1} parent=0 // pred_check
    _
  $region7: #{cnn_forward.1} parent=0 // pred_check_branch
    %15 = sbr.rel (0) target = $region9
  $region8: #{cnn_forward.1} parent=0 // pred_region
    _
  $region9: #{cnn_forward.1} parent=0 // pred_fallthru
    _
  // Predicated region
  $region10: #{cnn_forward.1} parent=0 // pred_check
    _
  $region11: #{cnn_forward.1} parent=0 // pred_check_branch
    %17 = sbr.rel (0) target = $region13
  $region12: #{cnn_forward.1} parent=0 // pred_region
    _
  $region13: #{cnn_forward.1} parent=0 // pred_fallthru
    _
  // Predicated region
  $region14: #{cnn_forward.1} parent=0 // pred_check
    _
  $region15: #{cnn_forward.1} parent=0 // pred_check_branch
    %19 = sbr.rel (0) target = $region17
  $region16: #{cnn_forward.1} parent=0 // pred_region
    _
  $region17: #{cnn_forward.1} parent=0 // pred_fallthru
    _
  // Predicated region
  $region18: #{cnn_forward.1} parent=0 // pred_check
    _
  $region19: #{cnn_forward.1} parent=0 // pred_check_branch
    %21 = sbr.rel (0) target = $region21
  $region20: #{cnn_forward.1} parent=0 // pred_region
    _
  $region21: #{cnn_forward.1} parent=0 // pred_fallthru
    _
  // Predicated region
  $region22: #{cnn_forward.1} parent=0 // pred_check
    _
  $region23: #{cnn_forward.1} parent=0 // pred_check_branch
    %23 = sbr.rel (0) target = $region25
  $region24: #{cnn_forward.1} parent=0 // pred_region
    _
  $region25: #{cnn_forward.1} parent=0 // pred_fallthru
    _
  // Predicated region
  $region26: #{cnn_forward.1} parent=0 // pred_check
    _
  $region27: #{cnn_forward.1} parent=0 // pred_check_branch
    %25 = sbr.rel (0) target = $region29
  $region28: #{cnn_forward.1} parent=0 // pred_region
    _
  $region29: #{cnn_forward.1} parent=0 // pred_fallthru
    _
  %v26 = vld [vmem:[%s0] sm:$0xff]
  %v27 = vld [vmem:[%s0 + $0x8] sm:$0xff]
  %v28 = vld [vmem:[%s0 + $0x10] sm:$0xff]
  %v29 = vld [vmem:[%s2] ss:$8 sm:$0x3]
  %v31 = vlaneseq
  %v32 = vshrl.u32 %v31, 7
  %v33 = vsub.s32 0, %v32
  %v34 = vrot.slane %v29, %v33
  %v35 = vlaneseq
  %v36 = vshrl.u32 %v35, 7
  %v37 = vsub.s32 1, %v36
  %v38 = vrot.slane %v29, %v37
  %39 = vrot.lane.b32.xlu0 %v34, 30
  %v40 = vpop.permute.xlu0 %39
  %41 = vrot.lane.b32.xlu0 %v38, 30
  %v42 = vpop.permute.xlu0 %41
  %vm43 = vcmask 244736
  %v44 = vsel %vm43, %v40, %v42
  %v48 = vmul.f32 %v26, %v40
  %v49 = vmul.f32 %v27, %v44
  %v50 = vmul.f32 %v28, %v42
  %s51 = scalar_lea.vmem %s2, 1
  %v52 = vld [vmem:[%s51] ss:$8 sm:$0x3]
  %v54 = vlaneseq
  %v55 = vshrl.u32 %v54, 7
  %v56 = vsub.s32 0, %v55
  %v57 = vrot.slane %v52, %v56
  %v58 = vlaneseq
  %v59 = vshrl.u32 %v58, 7
  %v60 = vsub.s32 1, %v59
  %v61 = vrot.slane %v52, %v60
  %62 = vrot.lane.b32.xlu0 %v57, 31
  %v63 = vpop.permute.xlu0 %62
  %64 = vrot.lane.b32.xlu0 %v61, 31
  %v65 = vpop.permute.xlu0 %64
  %vm66 = vcmask 252928
  %v67 = vsel %vm66, %v63, %v65
  %v71 = vmul.f32 %v26, %v63
  %v72 = vmul.f32 %v27, %v67
  %v73 = vmul.f32 %v28, %v65
  %s74 = scalar_lea.vmem %s2, 2
  %v75 = vld [vmem:[%s74] ss:$8 sm:$0x3]
  %v77 = vlaneseq
  %v78 = vshrl.u32 %v77, 7
  %v79 = vsub.s32 0, %v78
  %v80 = vrot.slane %v75, %v79
  %v81 = vlaneseq
  %v82 = vshrl.u32 %v81, 7
  %v83 = vsub.s32 1, %v82
  %v84 = vrot.slane %v75, %v83
  %85 = vrot.lane.b32.xlu0 %v80, 32
  %v86 = vpop.permute.xlu0 %85
  %87 = vrot.lane.b32.xlu0 %v84, 32
  %v88 = vpop.permute.xlu0 %87
  %vm89 = vcmask 261120
  %v90 = vsel %vm89, %v86, %v88
  %v94 = vmul.f32 %v26, %v86
  %v95 = vmul.f32 %v27, %v90
  %v96 = vmul.f32 %v28, %v88
  %s97 = scalar_lea.vmem %s2, 3
  %v98 = vld [vmem:[%s97] ss:$8 sm:$0x3]
  %v100 = vlaneseq
  %v101 = vshrl.u32 %v100, 7
  %v102 = vsub.s32 0, %v101
  %v103 = vrot.slane %v98, %v102
  %v104 = vlaneseq
  %v105 = vshrl.u32 %v104, 7
  %v106 = vsub.s32 1, %v105
  %v107 = vrot.slane %v98, %v106
  %108 = vrot.lane.b32.xlu0 %v103, 33
  %v109 = vpop.permute.xlu0 %108
  %110 = vrot.lane.b32.xlu0 %v107, 33
  %v111 = vpop.permute.xlu0 %110
  %vm112 = vcmask 269312
  %v113 = vsel %vm112, %v109, %v111
  %v117 = vmul.f32 %v26, %v109
  %v118 = vmul.f32 %v27, %v113
  %v119 = vmul.f32 %v28, %v111
  %s120 = scalar_lea.vmem %s2, 4
  %v121 = vld [vmem:[%s120] ss:$8 sm:$0x3]
  %v123 = vlaneseq
  %v124 = vshrl.u32 %v123, 7
  %v125 = vsub.s32 0, %v124
  %v126 = vrot.slane %v121, %v125
  %v127 = vlaneseq
  %v128 = vshrl.u32 %v127, 7
  %v129 = vsub.s32 1, %v128
  %v130 = vrot.slane %v121, %v129
  %131 = vrot.lane.b32.xlu0 %v126, 34
  %v132 = vpop.permute.xlu0 %131
  %133 = vrot.lane.b32.xlu0 %v130, 34
  %v134 = vpop.permute.xlu0 %133
  %vm135 = vcmask 277504
  %v136 = vsel %vm135, %v132, %v134
  %v140 = vmul.f32 %v26, %v132
  %v141 = vmul.f32 %v27, %v136
  %v142 = vmul.f32 %v28, %v134
  %s143 = scalar_lea.vmem %s2, 5
  %v144 = vld [vmem:[%s143] ss:$8 sm:$0x3]
  %v146 = vlaneseq
  %v147 = vshrl.u32 %v146, 7
  %v148 = vsub.s32 0, %v147
  %v149 = vrot.slane %v144, %v148
  %v150 = vlaneseq
  %v151 = vshrl.u32 %v150, 7
  %v152 = vsub.s32 1, %v151
  %v153 = vrot.slane %v144, %v152
  %154 = vrot.lane.b32.xlu0 %v149, 46
  %v155 = vpop.permute.xlu0 %154
  %156 = vrot.lane.b32.xlu0 %v153, 46
  %v157 = vpop.permute.xlu0 %156
  %vm158 = vcmask 375808
  %v159 = vsel %vm158, %v155, %v157
  %v163 = vmul.f32 %v26, %v155
  %v164 = vmul.f32 %v27, %v159
  %v165 = vmul.f32 %v28, %v157
  %s166 = scalar_lea.vmem %s2, 6
  %v167 = vld [vmem:[%s166] ss:$8 sm:$0x3]
  %v169 = vlaneseq
  %v170 = vshrl.u32 %v169, 7
  %v171 = vsub.s32 0, %v170
  %v172 = vrot.slane %v167, %v171
  %v173 = vlaneseq
  %v174 = vshrl.u32 %v173, 7
  %v175 = vsub.s32 1, %v174
  %v176 = vrot.slane %v167, %v175
  %177 = vrot.lane.b32.xlu0 %v172, 47
  %v178 = vpop.permute.xlu0 %177
  %179 = vrot.lane.b32.xlu0 %v176, 47
  %v180 = vpop.permute.xlu0 %179
  %vm181 = vcmask 384000
  %v182 = vsel %vm181, %v178, %v180
  %v186 = vmul.f32 %v26, %v178
  %v187 = vmul.f32 %v27, %v182
  %v188 = vmul.f32 %v28, %v180
  %s189 = scalar_lea.vmem %s2, 7
  %v190 = vld [vmem:[%s189] ss:$8 sm:$0x3]
  %v192 = vlaneseq
  %v193 = vshrl.u32 %v192, 7
  %v194 = vsub.s32 0, %v193
  %v195 = vrot.slane %v190, %v194
  %v196 = vlaneseq
  %v197 = vshrl.u32 %v196, 7
  %v198 = vsub.s32 1, %v197
  %v199 = vrot.slane %v190, %v198
  %200 = vrot.lane.b32.xlu0 %v195, 48
  %v201 = vpop.permute.xlu0 %200
  %202 = vrot.lane.b32.xlu0 %v199, 48
  %v203 = vpop.permute.xlu0 %202
  %vm204 = vcmask 392192
  %v205 = vsel %vm204, %v201, %v203
  %v209 = vmul.f32 %v26, %v201
  %v210 = vmul.f32 %v27, %v205
  %v211 = vmul.f32 %v28, %v203
  %s212 = scalar_lea.vmem %s2, 16
  %v213 = vld [vmem:[%s212] ss:$8 sm:$0x3]
  %v215 = vlaneseq
  %v216 = vshrl.u32 %v215, 7
  %v217 = vsub.s32 0, %v216
  %v218 = vrot.slane %v213, %v217
  %v219 = vlaneseq
  %v220 = vshrl.u32 %v219, 7
  %v221 = vsub.s32 1, %v220
  %v222 = vrot.slane %v213, %v221
  %223 = vrot.lane.b32.xlu0 %v218, 49
  %v224 = vpop.permute.xlu0 %223
  %225 = vrot.lane.b32.xlu0 %v222, 49
  %v226 = vpop.permute.xlu0 %225
  %vm227 = vcmask 400384
  %v228 = vsel %vm227, %v224, %v226
  %v232 = vmul.f32 %v26, %v224
  %v233 = vmul.f32 %v27, %v228
  %v234 = vmul.f32 %v28, %v226
  %s235 = scalar_lea.vmem %s2, 17
  %v236 = vld [vmem:[%s235] ss:$8 sm:$0x3]
  %v238 = vlaneseq
  %v239 = vshrl.u32 %v238, 7
  %v240 = vsub.s32 0, %v239
  %v241 = vrot.slane %v236, %v240
  %v242 = vlaneseq
  %v243 = vshrl.u32 %v242, 7
  %v244 = vsub.s32 1, %v243
  %v245 = vrot.slane %v236, %v244
  %246 = vrot.lane.b32.xlu0 %v241, 50
  %v247 = vpop.permute.xlu0 %246
  %248 = vrot.lane.b32.xlu0 %v245, 50
  %v249 = vpop.permute.xlu0 %248
  %vm250 = vcmask 408576
  %v251 = vsel %vm250, %v247, %v249
  %v255 = vmul.f32 %v26, %v247
  %v256 = vmul.f32 %v27, %v251
  %v257 = vmul.f32 %v28, %v249
  %s258 = scalar_lea.vmem %s2, 18
  %v259 = vld [vmem:[%s258] ss:$8 sm:$0x3]
  %v261 = vlaneseq
  %v262 = vshrl.u32 %v261, 7
  %v263 = vsub.s32 0, %v262
  %v264 = vrot.slane %v259, %v263
  %v265 = vlaneseq
  %v266 = vshrl.u32 %v265, 7
  %v267 = vsub.s32 1, %v266
  %v268 = vrot.slane %v259, %v267
  %269 = vrot.lane.b32.xlu0 %v264, 62
  %v270 = vpop.permute.xlu0 %269
  %271 = vrot.lane.b32.xlu0 %v268, 62
  %v272 = vpop.permute.xlu0 %271
  %vm273 = vcmask 506880
  %v274 = vsel %vm273, %v270, %v272
  %v278 = vmul.f32 %v26, %v270
  %v279 = vmul.f32 %v27, %v274
  %v280 = vmul.f32 %v28, %v272
  %s281 = scalar_lea.vmem %s2, 19
  %v282 = vld [vmem:[%s281] ss:$8 sm:$0x3]
  %v284 = vlaneseq
  %v285 = vshrl.u32 %v284, 7
  %v286 = vsub.s32 0, %v285
  %v287 = vrot.slane %v282, %v286
  %v288 = vlaneseq
  %v289 = vshrl.u32 %v288, 7
  %v290 = vsub.s32 1, %v289
  %v291 = vrot.slane %v282, %v290
  %292 = vrot.lane.b32.xlu0 %v287, 63
  %v293 = vpop.permute.xlu0 %292
  %294 = vrot.lane.b32.xlu0 %v291, 63
  %v295 = vpop.permute.xlu0 %294
  %vm296 = vcmask 515072
  %v297 = vsel %vm296, %v293, %v295
  %v301 = vmul.f32 %v26, %v293
  %v302 = vmul.f32 %v27, %v297
  %v303 = vmul.f32 %v28, %v295
  %s304 = scalar_lea.vmem %s2, 20
  %v305 = vld [vmem:[%s304] ss:$8 sm:$0x3]
  %v307 = vlaneseq
  %v308 = vshrl.u32 %v307, 7
  %v309 = vsub.s32 0, %v308
  %v310 = vrot.slane %v305, %v309
  %v311 = vlaneseq
  %v312 = vshrl.u32 %v311, 7
  %v313 = vsub.s32 1, %v312
  %v314 = vrot.slane %v305, %v313
  %315 = vrot.lane.b32.xlu0 %v310, 64
  %v316 = vpop.permute.xlu0 %315
  %317 = vrot.lane.b32.xlu0 %v314, 64
  %v318 = vpop.permute.xlu0 %317
  %vm319 = vcmask 523264
  %v320 = vsel %vm319, %v316, %v318
  %v324 = vmul.f32 %v26, %v316
  %v325 = vmul.f32 %v27, %v320
  %v326 = vmul.f32 %v28, %v318
  %s327 = scalar_lea.vmem %s2, 21
  %v328 = vld [vmem:[%s327] ss:$8 sm:$0x3]
  %v330 = vlaneseq
  %v331 = vshrl.u32 %v330, 7
  %v332 = vsub.s32 0, %v331
  %v333 = vrot.slane %v328, %v332
  %v334 = vlaneseq
  %v335 = vshrl.u32 %v334, 7
  %v336 = vsub.s32 1, %v335
  %v337 = vrot.slane %v328, %v336
  %338 = vrot.lane.b32.xlu0 %v333, 65
  %v339 = vpop.permute.xlu0 %338
  %340 = vrot.lane.b32.xlu0 %v337, 65
  %v341 = vpop.permute.xlu0 %340
  %vm342 = vcmask 531456
  %v343 = vsel %vm342, %v339, %v341
  %v347 = vmul.f32 %v26, %v339
  %v348 = vmul.f32 %v27, %v343
  %v349 = vmul.f32 %v28, %v341
  %s350 = scalar_lea.vmem %s2, 22
  %v351 = vld [vmem:[%s350] ss:$8 sm:$0x3]
  %v353 = vlaneseq
  %v354 = vshrl.u32 %v353, 7
  %v355 = vsub.s32 0, %v354
  %v356 = vrot.slane %v351, %v355
  %v357 = vlaneseq
  %v358 = vshrl.u32 %v357, 7
  %v359 = vsub.s32 1, %v358
  %v360 = vrot.slane %v351, %v359
  %361 = vrot.lane.b32.xlu0 %v356, 66
  %v362 = vpop.permute.xlu0 %361
  %363 = vrot.lane.b32.xlu0 %v360, 66
  %v364 = vpop.permute.xlu0 %363
  %vm365 = vcmask 539648
  %v366 = vsel %vm365, %v362, %v364
  %v370 = vmul.f32 %v26, %v362
  %v371 = vmul.f32 %v27, %v366
  %v372 = vmul.f32 %v28, %v364
  %s373 = scalar_lea.vmem %s2, 23
  %v374 = vld [vmem:[%s373] ss:$8 sm:$0x3]
  %v376 = vlaneseq
  %v377 = vshrl.u32 %v376, 7
  %v378 = vsub.s32 0, %v377
  %v379 = vrot.slane %v374, %v378
  %v380 = vlaneseq
  %v381 = vshrl.u32 %v380, 7
  %v382 = vsub.s32 1, %v381
  %v383 = vrot.slane %v374, %v382
  %384 = vrot.lane.b32.xlu0 %v379, 78
  %v385 = vpop.permute.xlu0 %384
  %386 = vrot.lane.b32.xlu0 %v383, 78
  %v387 = vpop.permute.xlu0 %386
  %vm388 = vcmask 637952
  %v389 = vsel %vm388, %v385, %v387
  %v393 = vmul.f32 %v26, %v385
  %v394 = vmul.f32 %v27, %v389
  %v395 = vmul.f32 %v28, %v387
  %s396 = scalar_lea.vmem %s2, 32
  %v397 = vld [vmem:[%s396] ss:$8 sm:$0x3]
  %v399 = vlaneseq
  %v400 = vshrl.u32 %v399, 7
  %v401 = vsub.s32 0, %v400
  %v402 = vrot.slane %v397, %v401
  %v403 = vlaneseq
  %v404 = vshrl.u32 %v403, 7
  %v405 = vsub.s32 1, %v404
  %v406 = vrot.slane %v397, %v405
  %407 = vrot.lane.b32.xlu0 %v402, 79
  %v408 = vpop.permute.xlu0 %407
  %409 = vrot.lane.b32.xlu0 %v406, 79
  %v410 = vpop.permute.xlu0 %409
  %vm411 = vcmask 646144
  %v412 = vsel %vm411, %v408, %v410
  %v416 = vmul.f32 %v26, %v408
  %v417 = vmul.f32 %v27, %v412
  %v418 = vmul.f32 %v28, %v410
  %s419 = scalar_lea.vmem %s2, 33
  %v420 = vld [vmem:[%s419] ss:$8 sm:$0x3]
  %v422 = vlaneseq
  %v423 = vshrl.u32 %v422, 7
  %v424 = vsub.s32 0, %v423
  %v425 = vrot.slane %v420, %v424
  %v426 = vlaneseq
  %v427 = vshrl.u32 %v426, 7
  %v428 = vsub.s32 1, %v427
  %v429 = vrot.slane %v420, %v428
  %430 = vrot.lane.b32.xlu0 %v425, 80
  %v431 = vpop.permute.xlu0 %430
  %432 = vrot.lane.b32.xlu0 %v429, 80
  %v433 = vpop.permute.xlu0 %432
  %vm434 = vcmask 654336
  %v435 = vsel %vm434, %v431, %v433
  %v439 = vmul.f32 %v26, %v431
  %v440 = vmul.f32 %v27, %v435
  %v441 = vmul.f32 %v28, %v433
  %s442 = scalar_lea.vmem %s2, 34
  %v443 = vld [vmem:[%s442] ss:$8 sm:$0x3]
  %v445 = vlaneseq
  %v446 = vshrl.u32 %v445, 7
  %v447 = vsub.s32 0, %v446
  %v448 = vrot.slane %v443, %v447
  %v449 = vlaneseq
  %v450 = vshrl.u32 %v449, 7
  %v451 = vsub.s32 1, %v450
  %v452 = vrot.slane %v443, %v451
  %453 = vrot.lane.b32.xlu0 %v448, 81
  %v454 = vpop.permute.xlu0 %453
  %455 = vrot.lane.b32.xlu0 %v452, 81
  %v456 = vpop.permute.xlu0 %455
  %vm457 = vcmask 662528
  %v458 = vsel %vm457, %v454, %v456
  %v462 = vmul.f32 %v26, %v454
  %v463 = vmul.f32 %v27, %v458
  %v464 = vmul.f32 %v28, %v456
  %s465 = scalar_lea.vmem %s2, 35
  %v466 = vld [vmem:[%s465] ss:$8 sm:$0x3]
  %v468 = vlaneseq
  %v469 = vshrl.u32 %v468, 7
  %v470 = vsub.s32 0, %v469
  %v471 = vrot.slane %v466, %v470
  %v472 = vlaneseq
  %v473 = vshrl.u32 %v472, 7
  %v474 = vsub.s32 1, %v473
  %v475 = vrot.slane %v466, %v474
  %476 = vrot.lane.b32.xlu0 %v471, 82
  %v477 = vpop.permute.xlu0 %476
  %478 = vrot.lane.b32.xlu0 %v475, 82
  %v479 = vpop.permute.xlu0 %478
  %vm480 = vcmask 670720
  %v481 = vsel %vm480, %v477, %v479
  %v485 = vmul.f32 %v26, %v477
  %v486 = vmul.f32 %v27, %v481
  %v487 = vmul.f32 %v28, %v479
  %s488 = scalar_lea.vmem %s2, 36
  %v489 = vld [vmem:[%s488] ss:$8 sm:$0x3]
  %v491 = vlaneseq
  %v492 = vshrl.u32 %v491, 7
  %v493 = vsub.s32 0, %v492
  %v494 = vrot.slane %v489, %v493
  %v495 = vlaneseq
  %v496 = vshrl.u32 %v495, 7
  %v497 = vsub.s32 1, %v496
  %v498 = vrot.slane %v489, %v497
  %499 = vrot.lane.b32.xlu0 %v494, 94
  %v500 = vpop.permute.xlu0 %499
  %501 = vrot.lane.b32.xlu0 %v498, 94
  %v502 = vpop.permute.xlu0 %501
  %vm503 = vcmask 769024
  %v504 = vsel %vm503, %v500, %v502
  %v508 = vmul.f32 %v26, %v500
  %v509 = vmul.f32 %v27, %v504
  %v510 = vmul.f32 %v28, %v502
  %s511 = scalar_lea.vmem %s2, 37
  %v512 = vld [vmem:[%s511] ss:$8 sm:$0x3]
  %v514 = vlaneseq
  %v515 = vshrl.u32 %v514, 7
  %v516 = vsub.s32 0, %v515
  %v517 = vrot.slane %v512, %v516
  %v518 = vlaneseq
  %v519 = vshrl.u32 %v518, 7
  %v520 = vsub.s32 1, %v519
  %v521 = vrot.slane %v512, %v520
  %522 = vrot.lane.b32.xlu0 %v517, 95
  %v523 = vpop.permute.xlu0 %522
  %524 = vrot.lane.b32.xlu0 %v521, 95
  %v525 = vpop.permute.xlu0 %524
  %vm526 = vcmask 777216
  %v527 = vsel %vm526, %v523, %v525
  %v531 = vmul.f32 %v26, %v523
  %v532 = vmul.f32 %v27, %v527
  %v533 = vmul.f32 %v28, %v525
  %s534 = scalar_lea.vmem %s2, 38
  %v535 = vld [vmem:[%s534] ss:$8 sm:$0x3]
  %v537 = vlaneseq
  %v538 = vshrl.u32 %v537, 7
  %v539 = vsub.s32 0, %v538
  %v540 = vrot.slane %v535, %v539
  %v541 = vlaneseq
  %v542 = vshrl.u32 %v541, 7
  %v543 = vsub.s32 1, %v542
  %v544 = vrot.slane %v535, %v543
  %545 = vrot.lane.b32.xlu0 %v540, 96
  %v546 = vpop.permute.xlu0 %545
  %547 = vrot.lane.b32.xlu0 %v544, 96
  %v548 = vpop.permute.xlu0 %547
  %vm549 = vcmask 785408
  %v550 = vsel %vm549, %v546, %v548
  %v554 = vmul.f32 %v26, %v546
  %v555 = vmul.f32 %v27, %v550
  %v556 = vmul.f32 %v28, %v548
  %s557 = scalar_lea.vmem %s2, 39
  %v558 = vld [vmem:[%s557] ss:$8 sm:$0x3]
  %v560 = vlaneseq
  %v561 = vshrl.u32 %v560, 7
  %v562 = vsub.s32 0, %v561
  %v563 = vrot.slane %v558, %v562
  %v564 = vlaneseq
  %v565 = vshrl.u32 %v564, 7
  %v566 = vsub.s32 1, %v565
  %v567 = vrot.slane %v558, %v566
  %568 = vrot.lane.b32.xlu0 %v563, 97
  %v569 = vpop.permute.xlu0 %568
  %570 = vrot.lane.b32.xlu0 %v567, 97
  %v571 = vpop.permute.xlu0 %570
  %vm572 = vcmask 793600
  %v573 = vsel %vm572, %v569, %v571
  %v577 = vmul.f32 %v26, %v569
  %v578 = vmul.f32 %v27, %v573
  %v579 = vmul.f32 %v28, %v571
  %s580 = scalar_lea.vmem %s2, 48
  %v581 = vld [vmem:[%s580] ss:$8 sm:$0x3]
  %v583 = vlaneseq
  %v584 = vshrl.u32 %v583, 7
  %v585 = vsub.s32 0, %v584
  %v586 = vrot.slane %v581, %v585
  %v587 = vlaneseq
  %v588 = vshrl.u32 %v587, 7
  %v589 = vsub.s32 1, %v588
  %v590 = vrot.slane %v581, %v589
  %591 = vrot.lane.b32.xlu0 %v586, 98
  %v592 = vpop.permute.xlu0 %591
  %593 = vrot.lane.b32.xlu0 %v590, 98
  %v594 = vpop.permute.xlu0 %593
  %vm595 = vcmask 801792
  %v596 = vsel %vm595, %v592, %v594
  %v600 = vmul.f32 %v26, %v592
  %v601 = vmul.f32 %v27, %v596
  %v602 = vmul.f32 %v28, %v594
  %606 = vrot.lane.b32.xlu0 %v71, 127
  %v607 = vpop.permute.xlu0 %606
  %608 = vrot.lane.b32.xlu0 %v72, 127
  %v609 = vpop.permute.xlu0 %608
  %610 = vrot.lane.b32.xlu0 %v73, 127
  %v611 = vpop.permute.xlu0 %610
  %vm612 = vcmask 1039360
  %v613 = vsel %vm612, %v607, %v609
  %v614 = vsel %vm612, %v609, %v611
  %618 = vrot.lane.b32.xlu0 %v94, 126
  %v619 = vpop.permute.xlu0 %618
  %620 = vrot.lane.b32.xlu0 %v95, 126
  %v621 = vpop.permute.xlu0 %620
  %622 = vrot.lane.b32.xlu0 %v96, 126
  %v623 = vpop.permute.xlu0 %622
  %vm624 = vcmask 1031168
  %v625 = vsel %vm624, %v619, %v621
  %v626 = vsel %vm624, %v621, %v623
  %630 = vrot.lane.b32.xlu0 %v117, 125
  %v631 = vpop.permute.xlu0 %630
  %632 = vrot.lane.b32.xlu0 %v118, 125
  %v633 = vpop.permute.xlu0 %632
  %634 = vrot.lane.b32.xlu0 %v119, 125
  %v635 = vpop.permute.xlu0 %634
  %vm636 = vcmask 1022976
  %v637 = vsel %vm636, %v631, %v633
  %v638 = vsel %vm636, %v633, %v635
  %642 = vrot.lane.b32.xlu0 %v140, 124
  %v643 = vpop.permute.xlu0 %642
  %644 = vrot.lane.b32.xlu0 %v141, 124
  %v645 = vpop.permute.xlu0 %644
  %646 = vrot.lane.b32.xlu0 %v142, 124
  %v647 = vpop.permute.xlu0 %646
  %vm648 = vcmask 1014784
  %v649 = vsel %vm648, %v643, %v645
  %v650 = vsel %vm648, %v645, %v647
  %654 = vrot.lane.b32.xlu0 %v163, 112
  %v655 = vpop.permute.xlu0 %654
  %656 = vrot.lane.b32.xlu0 %v164, 112
  %v657 = vpop.permute.xlu0 %656
  %658 = vrot.lane.b32.xlu0 %v165, 112
  %v659 = vpop.permute.xlu0 %658
  %vm660 = vcmask 916480
  %v661 = vsel %vm660, %v655, %v657
  %v662 = vsel %vm660, %v657, %v659
  %666 = vrot.lane.b32.xlu0 %v186, 111
  %v667 = vpop.permute.xlu0 %666
  %668 = vrot.lane.b32.xlu0 %v187, 111
  %v669 = vpop.permute.xlu0 %668
  %670 = vrot.lane.b32.xlu0 %v188, 111
  %v671 = vpop.permute.xlu0 %670
  %vm672 = vcmask 908288
  %v673 = vsel %vm672, %v667, %v669
  %v674 = vsel %vm672, %v669, %v671
  %678 = vrot.lane.b32.xlu0 %v209, 110
  %v679 = vpop.permute.xlu0 %678
  %680 = vrot.lane.b32.xlu0 %v210, 110
  %v681 = vpop.permute.xlu0 %680
  %682 = vrot.lane.b32.xlu0 %v211, 110
  %v683 = vpop.permute.xlu0 %682
  %vm684 = vcmask 900096
  %v685 = vsel %vm684, %v679, %v681
  %v686 = vsel %vm684, %v681, %v683
  %690 = vrot.lane.b32.xlu0 %v232, 109
  %v691 = vpop.permute.xlu0 %690
  %692 = vrot.lane.b32.xlu0 %v233, 109
  %v693 = vpop.permute.xlu0 %692
  %694 = vrot.lane.b32.xlu0 %v234, 109
  %v695 = vpop.permute.xlu0 %694
  %vm696 = vcmask 891904
  %v697 = vsel %vm696, %v691, %v693
  %v698 = vsel %vm696, %v693, %v695
  %702 = vrot.lane.b32.xlu0 %v255, 108
  %v703 = vpop.permute.xlu0 %702
  %704 = vrot.lane.b32.xlu0 %v256, 108
  %v705 = vpop.permute.xlu0 %704
  %706 = vrot.lane.b32.xlu0 %v257, 108
  %v707 = vpop.permute.xlu0 %706
  %vm708 = vcmask 883712
  %v709 = vsel %vm708, %v703, %v705
  %v710 = vsel %vm708, %v705, %v707
  %714 = vrot.lane.b32.xlu0 %v278, 96
  %v715 = vpop.permute.xlu0 %714
  %716 = vrot.lane.b32.xlu0 %v279, 96
  %v717 = vpop.permute.xlu0 %716
  %718 = vrot.lane.b32.xlu0 %v280, 96
  %v719 = vpop.permute.xlu0 %718
  %v720 = vsel %vm549, %v715, %v717
  %v721 = vsel %vm549, %v717, %v719
  %725 = vrot.lane.b32.xlu0 %v301, 95
  %v726 = vpop.permute.xlu0 %725
  %727 = vrot.lane.b32.xlu0 %v302, 95
  %v728 = vpop.permute.xlu0 %727
  %729 = vrot.lane.b32.xlu0 %v303, 95
  %v730 = vpop.permute.xlu0 %729
  %v731 = vsel %vm526, %v726, %v728
  %v732 = vsel %vm526, %v728, %v730
  %736 = vrot.lane.b32.xlu0 %v324, 94
  %v737 = vpop.permute.xlu0 %736
  %738 = vrot.lane.b32.xlu0 %v325, 94
  %v739 = vpop.permute.xlu0 %738
  %740 = vrot.lane.b32.xlu0 %v326, 94
  %v741 = vpop.permute.xlu0 %740
  %v742 = vsel %vm503, %v737, %v739
  %v743 = vsel %vm503, %v739, %v741
  %747 = vrot.lane.b32.xlu0 %v347, 93
  %v748 = vpop.permute.xlu0 %747
  %749 = vrot.lane.b32.xlu0 %v348, 93
  %v750 = vpop.permute.xlu0 %749
  %751 = vrot.lane.b32.xlu0 %v349, 93
  %v752 = vpop.permute.xlu0 %751
  %vm753 = vcmask 760832
  %v754 = vsel %vm753, %v748, %v750
  %v755 = vsel %vm753, %v750, %v752
  %759 = vrot.lane.b32.xlu0 %v370, 92
  %v760 = vpop.permute.xlu0 %759
  %761 = vrot.lane.b32.xlu0 %v371, 92
  %v762 = vpop.permute.xlu0 %761
  %763 = vrot.lane.b32.xlu0 %v372, 92
  %v764 = vpop.permute.xlu0 %763
  %vm765 = vcmask 752640
  %v766 = vsel %vm765, %v760, %v762
  %v767 = vsel %vm765, %v762, %v764
  %771 = vrot.lane.b32.xlu0 %v393, 80
  %v772 = vpop.permute.xlu0 %771
  %773 = vrot.lane.b32.xlu0 %v394, 80
  %v774 = vpop.permute.xlu0 %773
  %775 = vrot.lane.b32.xlu0 %v395, 80
  %v776 = vpop.permute.xlu0 %775
  %v777 = vsel %vm434, %v772, %v774
  %v778 = vsel %vm434, %v774, %v776
  %782 = vrot.lane.b32.xlu0 %v439, 127
  %v783 = vpop.permute.xlu0 %782
  %784 = vrot.lane.b32.xlu0 %v440, 127
  %v785 = vpop.permute.xlu0 %784
  %786 = vrot.lane.b32.xlu0 %v441, 127
  %v787 = vpop.permute.xlu0 %786
  %v788 = vsel %vm612, %v783, %v785
  %v789 = vsel %vm612, %v785, %v787
  %793 = vrot.lane.b32.xlu0 %v462, 126
  %v794 = vpop.permute.xlu0 %793
  %795 = vrot.lane.b32.xlu0 %v463, 126
  %v796 = vpop.permute.xlu0 %795
  %797 = vrot.lane.b32.xlu0 %v464, 126
  %v798 = vpop.permute.xlu0 %797
  %v799 = vsel %vm624, %v794, %v796
  %v800 = vsel %vm624, %v796, %v798
  %804 = vrot.lane.b32.xlu0 %v485, 125
  %v805 = vpop.permute.xlu0 %804
  %806 = vrot.lane.b32.xlu0 %v486, 125
  %v807 = vpop.permute.xlu0 %806
  %808 = vrot.lane.b32.xlu0 %v487, 125
  %v809 = vpop.permute.xlu0 %808
  %v810 = vsel %vm636, %v805, %v807
  %v811 = vsel %vm636, %v807, %v809
  %815 = vrot.lane.b32.xlu0 %v508, 113
  %v816 = vpop.permute.xlu0 %815
  %817 = vrot.lane.b32.xlu0 %v509, 113
  %v818 = vpop.permute.xlu0 %817
  %819 = vrot.lane.b32.xlu0 %v510, 113
  %v820 = vpop.permute.xlu0 %819
  %vm821 = vcmask 924672
  %v822 = vsel %vm821, %v816, %v818
  %v823 = vsel %vm821, %v818, %v820
  %827 = vrot.lane.b32.xlu0 %v531, 112
  %v828 = vpop.permute.xlu0 %827
  %829 = vrot.lane.b32.xlu0 %v532, 112
  %v830 = vpop.permute.xlu0 %829
  %831 = vrot.lane.b32.xlu0 %v533, 112
  %v832 = vpop.permute.xlu0 %831
  %v833 = vsel %vm660, %v828, %v830
  %v834 = vsel %vm660, %v830, %v832
  %838 = vrot.lane.b32.xlu0 %v554, 111
  %v839 = vpop.permute.xlu0 %838
  %840 = vrot.lane.b32.xlu0 %v555, 111
  %v841 = vpop.permute.xlu0 %840
  %842 = vrot.lane.b32.xlu0 %v556, 111
  %v843 = vpop.permute.xlu0 %842
  %v844 = vsel %vm672, %v839, %v841
  %v845 = vsel %vm672, %v841, %v843
  %849 = vrot.lane.b32.xlu0 %v577, 110
  %v850 = vpop.permute.xlu0 %849
  %851 = vrot.lane.b32.xlu0 %v578, 110
  %v852 = vpop.permute.xlu0 %851
  %853 = vrot.lane.b32.xlu0 %v579, 110
  %v854 = vpop.permute.xlu0 %853
  %v855 = vsel %vm684, %v850, %v852
  %v856 = vsel %vm684, %v852, %v854
  %860 = vrot.lane.b32.xlu0 %v600, 109
  %v861 = vpop.permute.xlu0 %860
  %862 = vrot.lane.b32.xlu0 %v601, 109
  %v863 = vpop.permute.xlu0 %862
  %864 = vrot.lane.b32.xlu0 %v602, 109
  %v865 = vpop.permute.xlu0 %864
  %v866 = vsel %vm696, %v861, %v863
  %v867 = vsel %vm696, %v863, %v865
  %871 = vrot.lane.b32.xlu0 %v416, 79
  %v872 = vpop.permute.xlu0 %871
  %873 = vrot.lane.b32.xlu0 %v417, 79
  %v874 = vpop.permute.xlu0 %873
  %875 = vrot.lane.b32.xlu0 %v418, 79
  %v876 = vpop.permute.xlu0 %875
  %877 = vrot.lane.b32.xlu0 %v788, 79
  %v878 = vpop.permute.xlu0 %877
  %879 = vrot.lane.b32.xlu0 %v789, 79
  %v880 = vpop.permute.xlu0 %879
  %881 = vrot.lane.b32.xlu0 %v787, 79
  %v882 = vpop.permute.xlu0 %881
  %883 = vrot.lane.b32.xlu0 %v799, 79
  %v884 = vpop.permute.xlu0 %883
  %885 = vrot.lane.b32.xlu0 %v800, 79
  %v886 = vpop.permute.xlu0 %885
  %887 = vrot.lane.b32.xlu0 %v798, 79
  %v888 = vpop.permute.xlu0 %887
  %889 = vrot.lane.b32.xlu0 %v810, 79
  %v890 = vpop.permute.xlu0 %889
  %891 = vrot.lane.b32.xlu0 %v811, 79
  %v892 = vpop.permute.xlu0 %891
  %893 = vrot.lane.b32.xlu0 %v809, 79
  %v894 = vpop.permute.xlu0 %893
  %895 = vrot.lane.b32.xlu0 %v822, 79
  %v896 = vpop.permute.xlu0 %895
  %897 = vrot.lane.b32.xlu0 %v823, 79
  %v898 = vpop.permute.xlu0 %897
  %899 = vrot.lane.b32.xlu0 %v820, 79
  %v900 = vpop.permute.xlu0 %899
  %901 = vrot.lane.b32.xlu0 %v833, 79
  %v902 = vpop.permute.xlu0 %901
  %903 = vrot.lane.b32.xlu0 %v834, 79
  %v904 = vpop.permute.xlu0 %903
  %905 = vrot.lane.b32.xlu0 %v832, 79
  %v906 = vpop.permute.xlu0 %905
  %907 = vrot.lane.b32.xlu0 %v844, 79
  %v908 = vpop.permute.xlu0 %907
  %909 = vrot.lane.b32.xlu0 %v845, 79
  %v910 = vpop.permute.xlu0 %909
  %911 = vrot.lane.b32.xlu0 %v843, 79
  %v912 = vpop.permute.xlu0 %911
  %913 = vrot.lane.b32.xlu0 %v855, 79
  %v914 = vpop.permute.xlu0 %913
  %915 = vrot.lane.b32.xlu0 %v856, 79
  %v916 = vpop.permute.xlu0 %915
  %917 = vrot.lane.b32.xlu0 %v854, 79
  %v918 = vpop.permute.xlu0 %917
  %919 = vrot.lane.b32.xlu0 %v866, 79
  %v920 = vpop.permute.xlu0 %919
  %921 = vrot.lane.b32.xlu0 %v867, 79
  %v922 = vpop.permute.xlu0 %921
  %923 = vrot.lane.b32.xlu0 %v865, 79
  %v924 = vpop.permute.xlu0 %923
  %v925 = vsel %vm411, %v872, %v874
  %v926 = vsel %vm411, %v874, %v876
  %v927 = vsel %vm411, %v878, %v880
  %v928 = vsel %vm411, %v880, %v882
  %v929 = vsel %vm411, %v884, %v886
  %v930 = vsel %vm411, %v886, %v888
  %v931 = vsel %vm411, %v890, %v892
  %v932 = vsel %vm411, %v892, %v894
  %v933 = vsel %vm411, %v896, %v898
  %v934 = vsel %vm411, %v898, %v900
  %v935 = vsel %vm411, %v902, %v904
  %v936 = vsel %vm411, %v904, %v906
  %v937 = vsel %vm411, %v908, %v910
  %v938 = vsel %vm411, %v910, %v912
  %v939 = vsel %vm411, %v914, %v916
  %v940 = vsel %vm411, %v916, %v918
  %v941 = vsel %vm411, %v920, %v922
  %v942 = vsel %vm411, %v922, %v924
  %v943 = vld [vmem:[%s1] sm:$0xff]
  %v944 = vld [vmem:[%s1 + $0x8] sm:$0xff]
  %v945 = vld [vmem:[%s3] sm:$0xff]
  %947 = vset.pattern.permute.xlu0 0
  %948 = vperm.xlu0 %947, %v945
  %v949 = vpop.permute.xlu0 %948
  %954 = vrot.lane.b32.xlu0 %v48, 98
  %v955 = vpop.permute.xlu0 %954
  %956 = vrot.lane.b32.xlu0 %v49, 98
  %v957 = vpop.permute.xlu0 %956
  %958 = vrot.lane.b32.xlu0 %v50, 98
  %v959 = vpop.permute.xlu0 %958
  %960 = vrot.lane.b32.xlu0 %v613, 98
  %v961 = vpop.permute.xlu0 %960
  %962 = vrot.lane.b32.xlu0 %v614, 98
  %v963 = vpop.permute.xlu0 %962
  %964 = vrot.lane.b32.xlu0 %v611, 98
  %v965 = vpop.permute.xlu0 %964
  %966 = vrot.lane.b32.xlu0 %v625, 98
  %v967 = vpop.permute.xlu0 %966
  %968 = vrot.lane.b32.xlu0 %v626, 98
  %v969 = vpop.permute.xlu0 %968
  %970 = vrot.lane.b32.xlu0 %v623, 98
  %v971 = vpop.permute.xlu0 %970
  %972 = vrot.lane.b32.xlu0 %v637, 98
  %v973 = vpop.permute.xlu0 %972
  %974 = vrot.lane.b32.xlu0 %v638, 98
  %v975 = vpop.permute.xlu0 %974
  %976 = vrot.lane.b32.xlu0 %v635, 98
  %v977 = vpop.permute.xlu0 %976
  %978 = vrot.lane.b32.xlu0 %v649, 98
  %v979 = vpop.permute.xlu0 %978
  %980 = vrot.lane.b32.xlu0 %v650, 98
  %v981 = vpop.permute.xlu0 %980
  %982 = vrot.lane.b32.xlu0 %v647, 98
  %v983 = vpop.permute.xlu0 %982
  %984 = vrot.lane.b32.xlu0 %v661, 98
  %v985 = vpop.permute.xlu0 %984
  %986 = vrot.lane.b32.xlu0 %v662, 98
  %v987 = vpop.permute.xlu0 %986
  %988 = vrot.lane.b32.xlu0 %v659, 98
  %v989 = vpop.permute.xlu0 %988
  %990 = vrot.lane.b32.xlu0 %v673, 98
  %v991 = vpop.permute.xlu0 %990
  %992 = vrot.lane.b32.xlu0 %v674, 98
  %v993 = vpop.permute.xlu0 %992
  %994 = vrot.lane.b32.xlu0 %v671, 98
  %v995 = vpop.permute.xlu0 %994
  %996 = vrot.lane.b32.xlu0 %v685, 98
  %v997 = vpop.permute.xlu0 %996
  %998 = vrot.lane.b32.xlu0 %v686, 98
  %v999 = vpop.permute.xlu0 %998
  %1000 = vrot.lane.b32.xlu0 %v683, 98
  %v1001 = vpop.permute.xlu0 %1000
  %1002 = vrot.lane.b32.xlu0 %v697, 98
  %v1003 = vpop.permute.xlu0 %1002
  %1004 = vrot.lane.b32.xlu0 %v698, 98
  %v1005 = vpop.permute.xlu0 %1004
  %1006 = vrot.lane.b32.xlu0 %v695, 98
  %v1007 = vpop.permute.xlu0 %1006
  %1008 = vrot.lane.b32.xlu0 %v709, 98
  %v1009 = vpop.permute.xlu0 %1008
  %1010 = vrot.lane.b32.xlu0 %v710, 98
  %v1011 = vpop.permute.xlu0 %1010
  %1012 = vrot.lane.b32.xlu0 %v707, 98
  %v1013 = vpop.permute.xlu0 %1012
  %1014 = vrot.lane.b32.xlu0 %v720, 98
  %v1015 = vpop.permute.xlu0 %1014
  %1016 = vrot.lane.b32.xlu0 %v721, 98
  %v1017 = vpop.permute.xlu0 %1016
  %1018 = vrot.lane.b32.xlu0 %v719, 98
  %v1019 = vpop.permute.xlu0 %1018
  %1020 = vrot.lane.b32.xlu0 %v731, 98
  %v1021 = vpop.permute.xlu0 %1020
  %1022 = vrot.lane.b32.xlu0 %v732, 98
  %v1023 = vpop.permute.xlu0 %1022
  %1024 = vrot.lane.b32.xlu0 %v730, 98
  %v1025 = vpop.permute.xlu0 %1024
  %1026 = vrot.lane.b32.xlu0 %v742, 98
  %v1027 = vpop.permute.xlu0 %1026
  %1028 = vrot.lane.b32.xlu0 %v743, 98
  %v1029 = vpop.permute.xlu0 %1028
  %1030 = vrot.lane.b32.xlu0 %v741, 98
  %v1031 = vpop.permute.xlu0 %1030
  %1032 = vrot.lane.b32.xlu0 %v754, 98
  %v1033 = vpop.permute.xlu0 %1032
  %1034 = vrot.lane.b32.xlu0 %v755, 98
  %v1035 = vpop.permute.xlu0 %1034
  %1036 = vrot.lane.b32.xlu0 %v752, 98
  %v1037 = vpop.permute.xlu0 %1036
  %1038 = vrot.lane.b32.xlu0 %v766, 98
  %v1039 = vpop.permute.xlu0 %1038
  %1040 = vrot.lane.b32.xlu0 %v767, 98
  %v1041 = vpop.permute.xlu0 %1040
  %1042 = vrot.lane.b32.xlu0 %v764, 98
  %v1043 = vpop.permute.xlu0 %1042
  %1044 = vrot.lane.b32.xlu0 %v777, 98
  %v1045 = vpop.permute.xlu0 %1044
  %1046 = vrot.lane.b32.xlu0 %v778, 98
  %v1047 = vpop.permute.xlu0 %1046
  %1048 = vrot.lane.b32.xlu0 %v776, 98
  %v1049 = vpop.permute.xlu0 %1048
  %1050 = vrot.lane.b32.xlu0 %v925, 98
  %v1051 = vpop.permute.xlu0 %1050
  %1052 = vrot.lane.b32.xlu0 %v926, 98
  %v1053 = vpop.permute.xlu0 %1052
  %1054 = vrot.lane.b32.xlu0 %v876, 98
  %v1055 = vpop.permute.xlu0 %1054
  %1056 = vrot.lane.b32.xlu0 %v927, 98
  %v1057 = vpop.permute.xlu0 %1056
  %1058 = vrot.lane.b32.xlu0 %v928, 98
  %v1059 = vpop.permute.xlu0 %1058
  %1060 = vrot.lane.b32.xlu0 %v882, 98
  %v1061 = vpop.permute.xlu0 %1060
  %1062 = vrot.lane.b32.xlu0 %v929, 98
  %v1063 = vpop.permute.xlu0 %1062
  %1064 = vrot.lane.b32.xlu0 %v930, 98
  %v1065 = vpop.permute.xlu0 %1064
  %1066 = vrot.lane.b32.xlu0 %v888, 98
  %v1067 = vpop.permute.xlu0 %1066
  %1068 = vrot.lane.b32.xlu0 %v931, 98
  %v1069 = vpop.permute.xlu0 %1068
  %1070 = vrot.lane.b32.xlu0 %v932, 98
  %v1071 = vpop.permute.xlu0 %1070
  %1072 = vrot.lane.b32.xlu0 %v894, 98
  %v1073 = vpop.permute.xlu0 %1072
  %1074 = vrot.lane.b32.xlu0 %v933, 98
  %v1075 = vpop.permute.xlu0 %1074
  %1076 = vrot.lane.b32.xlu0 %v934, 98
  %v1077 = vpop.permute.xlu0 %1076
  %1078 = vrot.lane.b32.xlu0 %v900, 98
  %v1079 = vpop.permute.xlu0 %1078
  %1080 = vrot.lane.b32.xlu0 %v935, 98
  %v1081 = vpop.permute.xlu0 %1080
  %1082 = vrot.lane.b32.xlu0 %v936, 98
  %v1083 = vpop.permute.xlu0 %1082
  %1084 = vrot.lane.b32.xlu0 %v906, 98
  %v1085 = vpop.permute.xlu0 %1084
  %1086 = vrot.lane.b32.xlu0 %v937, 98
  %v1087 = vpop.permute.xlu0 %1086
  %1088 = vrot.lane.b32.xlu0 %v938, 98
  %v1089 = vpop.permute.xlu0 %1088
  %1090 = vrot.lane.b32.xlu0 %v912, 98
  %v1091 = vpop.permute.xlu0 %1090
  %1092 = vrot.lane.b32.xlu0 %v939, 98
  %v1093 = vpop.permute.xlu0 %1092
  %1094 = vrot.lane.b32.xlu0 %v940, 98
  %v1095 = vpop.permute.xlu0 %1094
  %1096 = vrot.lane.b32.xlu0 %v918, 98
  %v1097 = vpop.permute.xlu0 %1096
  %1098 = vrot.lane.b32.xlu0 %v941, 98
  %v1099 = vpop.permute.xlu0 %1098
  %1100 = vrot.lane.b32.xlu0 %v942, 98
  %v1101 = vpop.permute.xlu0 %1100
  %1102 = vrot.lane.b32.xlu0 %v924, 98
  %v1103 = vpop.permute.xlu0 %1102
  %v1104 = vsel %vm595, %v955, %v957
  %v1105 = vsel %vm595, %v957, %v959
  %v1106 = vsel %vm595, %v961, %v963
  %v1107 = vsel %vm595, %v963, %v965
  %v1108 = vsel %vm595, %v967, %v969
  %v1109 = vsel %vm595, %v969, %v971
  %v1110 = vsel %vm595, %v973, %v975
  %v1111 = vsel %vm595, %v975, %v977
  %v1112 = vsel %vm595, %v979, %v981
  %v1113 = vsel %vm595, %v981, %v983
  %v1114 = vsel %vm595, %v985, %v987
  %v1115 = vsel %vm595, %v987, %v989
  %v1116 = vsel %vm595, %v991, %v993
  %v1117 = vsel %vm595, %v993, %v995
  %v1118 = vsel %vm595, %v997, %v999
  %v1119 = vsel %vm595, %v999, %v1001
  %v1120 = vsel %vm595, %v1003, %v1005
  %v1121 = vsel %vm595, %v1005, %v1007
  %v1122 = vsel %vm595, %v1009, %v1011
  %v1123 = vsel %vm595, %v1011, %v1013
  %v1124 = vsel %vm595, %v1015, %v1017
  %v1125 = vsel %vm595, %v1017, %v1019
  %v1126 = vsel %vm595, %v1021, %v1023
  %v1127 = vsel %vm595, %v1023, %v1025
  %v1128 = vsel %vm595, %v1027, %v1029
  %v1129 = vsel %vm595, %v1029, %v1031
  %v1130 = vsel %vm595, %v1033, %v1035
  %v1131 = vsel %vm595, %v1035, %v1037
  %v1132 = vsel %vm595, %v1039, %v1041
  %v1133 = vsel %vm595, %v1041, %v1043
  %v1134 = vsel %vm595, %v1045, %v1047
  %v1135 = vsel %vm595, %v1047, %v1049
  %v1136 = vsel %vm595, %v1051, %v1053
  %v1137 = vsel %vm595, %v1053, %v1055
  %v1138 = vsel %vm595, %v1057, %v1059
  %v1139 = vsel %vm595, %v1059, %v1061
  %v1140 = vsel %vm595, %v1063, %v1065
  %v1141 = vsel %vm595, %v1065, %v1067
  %v1142 = vsel %vm595, %v1069, %v1071
  %v1143 = vsel %vm595, %v1071, %v1073
  %v1144 = vsel %vm595, %v1075, %v1077
  %v1145 = vsel %vm595, %v1077, %v1079
  %v1146 = vsel %vm595, %v1081, %v1083
  %v1147 = vsel %vm595, %v1083, %v1085
  %v1148 = vsel %vm595, %v1087, %v1089
  %v1149 = vsel %vm595, %v1089, %v1091
  %v1150 = vsel %vm595, %v1093, %v1095
  %v1151 = vsel %vm595, %v1095, %v1097
  %v1152 = vsel %vm595, %v1099, %v1101
  %v1153 = vsel %vm595, %v1101, %v1103
  %vm1204 = vcmask 588800
  %v1206 = vsel %vm1204, %v944, 0
  %1208 = vmatprep.subr.mxu0 %v1105
  %1209 = vmatpush1.msra.mxu0 %v1104
  %1210 = vmatprep.subr.mxu0 %v1107
  %1211 = vmatpush1.msra.mxu0 %v1106
  %1212 = vmatprep.subr.mxu0 %v1109
  %1213 = vmatpush1.msra.mxu0 %v1108
  %1214 = vmatprep.subr.mxu0 %v1111
  %1215 = vmatpush1.msra.mxu0 %v1110
  %1216 = vmatprep.subr.mxu0 %v1113
  %1217 = vmatpush1.msra.mxu0 %v1112
  %1218 = vmatprep.subr.mxu0 %v1115
  %1219 = vmatpush1.msra.mxu0 %v1114
  %1220 = vmatprep.subr.mxu0 %v1117
  %1221 = vmatpush1.msra.mxu0 %v1116
  %1222 = vmatprep.subr.mxu0 %v1119
  %1223 = vmatpush1.msra.mxu0 %v1118
  %1224 = vmatprep.subr.mxu0 %v1121
  %1225 = vmatpush1.msra.mxu0 %v1120
  %1226 = vmatprep.subr.mxu0 %v1123
  %1227 = vmatpush1.msra.mxu0 %v1122
  %1228 = vmatprep.subr.mxu0 %v1125
  %1229 = vmatpush1.msra.mxu0 %v1124
  %1230 = vmatprep.subr.mxu0 %v1127
  %1231 = vmatpush1.msra.mxu0 %v1126
  %1232 = vmatprep.subr.mxu0 %v1129
  %1233 = vmatpush1.msra.mxu0 %v1128
  %1234 = vmatprep.subr.mxu0 %v1131
  %1235 = vmatpush1.msra.mxu0 %v1130
  %1236 = vmatprep.subr.mxu0 %v1133
  %1237 = vmatpush1.msra.mxu0 %v1132
  %1238 = vmatprep.subr.mxu0 %v1135
  %1239 = vmatpush1.msra.mxu0 %v1134
  %1240 = vmatprep.subr.mxu0 %v1137
  %1241 = vmatpush1.msra.mxu0 %v1136
  %1242 = vmatprep.subr.mxu0 %v1139
  %1243 = vmatpush1.msra.mxu0 %v1138
  %1244 = vmatprep.subr.mxu0 %v1141
  %1245 = vmatpush1.msra.mxu0 %v1140
  %1246 = vmatprep.subr.mxu0 %v1143
  %1247 = vmatpush1.msra.mxu0 %v1142
  %1248 = vmatprep.subr.mxu0 %v1145
  %1249 = vmatpush1.msra.mxu0 %v1144
  %1250 = vmatprep.subr.mxu0 %v1147
  %1251 = vmatpush1.msra.mxu0 %v1146
  %1252 = vmatprep.subr.mxu0 %v1149
  %1253 = vmatpush1.msra.mxu0 %v1148
  %1254 = vmatprep.subr.mxu0 %v1151
  %1255 = vmatpush1.msra.mxu0 %v1150
  %1256 = vmatprep.subr.mxu0 %v1153
  %1257 = vmatpush1.msra.mxu0 %v1152
  %1258 = vmatprep.subr.mxu0 0.0
  %1259 = vmatpush1.msra.mxu0 0.0
  %1260 = vmatprep.subr.mxu0 0.0
  %1261 = vmatpush1.msra.mxu0 0.0
  %1262 = vmatprep.subr.mxu0 0.0
  %1263 = vmatpush1.msra.mxu0 0.0
  %1264 = vmatprep.subr.mxu0 0.0
  %1265 = vmatpush1.msra.mxu0 0.0
  %1266 = vmatprep.subr.mxu0 0.0
  %1267 = vmatpush1.msra.mxu0 0.0
  %1268 = vmatprep.subr.mxu0 0.0
  %1269 = vmatpush1.msra.mxu0 0.0
  %1270 = vmatprep.subr.mxu0 0.0
  %1271 = vmatpush1.msra.mxu0 0.0
  %1272 = vmatprep.mubr.f32.mxu0 %v1206
  %1273 = vmatmul.mubr.f32.gmra.mrb[0].mxu0 %v943
  %v1274 = vpop.f32.mrb[0].mxu0
  %v1275 = vadd.f32 %v949, %v1274
  %v1276 = vpop.f32.mrb[0].mxu0
  %v1277 = vadd.f32 %v949, %v1276
  %1278 = vdwg.mxu0
  %v1279 = vtanh.pop %v1275
  %v1280 = vtanh.pop %v1277
  %v1281 = vmul.f32 %v1279, 0.01
  %v1282 = vmul.f32 %v1280, 0.01
  %1286 = vrot.lane.b32.xlu0 %v26, 64
  %v1287 = vpop.permute.xlu0 %1286
  %1288 = vrot.lane.b32.xlu0 %v27, 64
  %v1289 = vpop.permute.xlu0 %1288
  %1290 = vrot.lane.b32.xlu0 %v28, 64
  %v1291 = vpop.permute.xlu0 %1290
  %v1292 = vsel %vm319, %v1287, %v1289
  %v1293 = vsel %vm319, %v1289, %v1291
  %v1296 = vadd.f32 %v1281, %v1292
  %v1297 = vadd.f32 %v1282, %v1293
  %v1298 = vld [vmem:[%s4] sm:$0xff]
  %1300 = vset.pattern.permute.xlu0 0
  %1301 = vperm.xlu0 %1300, %v1298
  %v1302 = vpop.permute.xlu0 %1301
  %v1304 = vmul.f32 %v1296, %v1302
  %v1305 = vmul.f32 %v1297, %v1302
  %v1308 = vrot.slane %v1304, 4
  %v1309 = vrot.slane %v1305, 4
  %v1312 = vadd.f32 %v1304, %v1308
  %v1313 = vadd.f32 %v1305, %v1309
  %v1314 = vld [vmem:[%s5] sm:$0xff]
  %v1315 = vld [vmem:[%s5 + $0x8] sm:$0xff]
  %v1316 = vmul.f32 %v1314, %v1312
  %v1317 = vmul.f32 %v1315, %v1313
  %vm1318 = vcmask 1043456
  %v1319 = vsel %vm1318, %v1316, 0.0
  %v1320 = vsel %vm1318, %v1317, 0.0
  %v1321 = vadd.f32 %v1319, %v1320
  %1322 = vadd.xlane.f32.xlu0 %v1321
  %v1323 = vpop.xlane.xlu0 %1322
  %v1324 = vsel %vm1318, %v1323, 0.0
  %v1325 = vrot.slane %v1324, 4
  %v1326 = vadd.f32 %v1324, %v1325
  %v1327 = vrot.slane %v1326, 2
  %v1328 = vadd.f32 %v1326, %v1327
  %v1329 = vrot.slane %v1328, 1
  %v1330 = vadd.f32 %v1328, %v1329
  %v1333 = vrot.slane %v1312, 4
  %v1334 = vrot.slane %v1313, 4
  %v1337 = vmul.f32 %v1314, %v1333
  %v1338 = vmul.f32 %v1315, %v1334
  %vm1339 = vcmask 1047556
  %v1340 = vsel %vm1339, %v1337, 0.0
  %v1341 = vsel %vm1339, %v1338, 0.0
  %v1342 = vadd.f32 %v1340, %v1341
  %1343 = vadd.xlane.f32.xlu0 %v1342
  %v1344 = vpop.xlane.xlu0 %1343
  %v1346 = vrot.slane %v1344, 4
  %v1348 = vsel %vm1318, %v1346, 0.0
  %v1349 = vrot.slane %v1348, 4
  %v1350 = vadd.f32 %v1348, %v1349
  %v1351 = vrot.slane %v1350, 2
  %v1352 = vadd.f32 %v1350, %v1351
  %v1353 = vrot.slane %v1352, 1
  %v1354 = vadd.f32 %v1352, %v1353
  %vm1355 = vcmask 1040384
  %v1356 = vsel %vm1355, %v1330, %v1354
  %v1357 = vld [vmem:[%s6] sm:$0x3]
  %v1358 = vadd.f32 %v1356, %v1357
  %vm1359 = vcmask 1024
  %1360 = vst.msk [vmem:[%s7] sm:$0x3] %vm1359, %v1358
  // Predicated region
  $region30: #{cnn_forward.1} parent=0 // pred_check
    _
  $region31: #{cnn_forward.1} parent=0 // pred_check_branch
    %1362 = sbr.rel (0) target = $region33
  $region32: #{cnn_forward.1} parent=0 // pred_region
    _
  $region33: #{cnn_forward.1} parent=0 // pred_fallthru
    _
  // Predicated region
  $region34: #{cnn_forward.1} parent=0 // pred_check
    _
  $region35: #{cnn_forward.1} parent=0 // pred_check_branch
    %1364 = sbr.rel (0) target = $region37
  $region36: #{cnn_forward.1} parent=0 // pred_region
    _
  $region37: #{cnn_forward.1} parent=0 // pred_fallthru
    _

</llo_original>
